<compile_context>
chip_gen: v7x
topology: tpu7x:2x2x1
jax: 0.10.0
libtpu: 0.0.40
codegen_flags: <defaults>
</compile_context>

<pallas_src>
import jax
import jax.numpy as jnp
from jax.experimental import pallas as pl
from jax.experimental.pallas import tpu as pltpu
import numpy as np

LANE = 128


def match_scorer_kernel(q_ref, tbl_ref, mask_ref, w1q_ref, w1t_ref, b1_ref,
                        w2_ref, out_ref):
    # q_ref:    (TB, H)       input dtype (f32 or bf16), batch-tiled
    # tbl_ref:  (T, TB, H)    input dtype, PyTorch (T, B, H) layout, batch-tiled
    # mask_ref: (T, TB)       int32, nonzero => masked
    # w1q_ref:  (H, S), w1t_ref: (H, S)   input dtype (VMEM-resident)
    # b1_ref:   (1, S) f32, w2_ref: (1, S) f32 (VMEM-resident)
    # out_ref:  (T, TB) f32   -- batch on the lane axis: lane-dense stores
    T, TB, H = tbl_ref.shape
    S = w1q_ref.shape[1]
    f32 = jnp.float32

    # --- First linear, split across the concat (MXU, f32 accumulate) ------------
    #   cat([q, tbl], -1) @ W1 == q @ W1[:H] + tbl @ W1[H:]
    hq = jnp.dot(q_ref[...], w1q_ref[...], preferred_element_type=f32)       # (TB, S)
    # Collapse leading dims only (lane dim H untouched; TB is a multiple of the
    # sublane pack in the tiled path), so this reshape is layout-preserving.
    tbl2d = tbl_ref[...].reshape(T * TB, H)
    ht = jnp.dot(tbl2d, w1t_ref[...], preferred_element_type=f32)            # (T*TB, S)

    hidden = jnp.tanh(ht.reshape(T, TB, S)
                      + hq[None, :, :]
                      + b1_ref[...].astype(f32))                             # (T, TB, S)

    # --- Second linear (S -> 1): VPU multiply + lane reduce ----------------------
    # b2 omitted: log_softmax is shift-invariant per batch column, so a scalar bias
    # cancels exactly.
    score = jnp.sum(hidden * w2_ref[...].astype(f32), axis=-1)               # (T, TB)

    # --- masked_fill(-inf) + log_softmax over headers (axis 0, f32 VPU/EUP) ------
    score = jnp.where(mask_ref[...] != 0, -jnp.inf, score)
    m = jnp.max(score, axis=0, keepdims=True)                                # (1, TB)
    e = jnp.exp(score - m)
    lse = jnp.log(jnp.sum(e, axis=0, keepdims=True)) + m
    # NOTE: a fully-masked column yields -inf - (-inf) = NaN, matching PyTorch.
    out_ref[...] = (score - lse).astype(out_ref.dtype)


def match_scorer(q_enc, tbl_enc, tbl_mask, w1, b1, w2, b2, *, batch_tile=1024):
    """MatchScorer forward (eval mode).

    q_enc:   (B, H)          f32 or bf16
    tbl_enc: (T, B, H)       PyTorch layout (num_headers, batch, rnn_size)
    tbl_mask:(B, T)          bool, True => masked
    w1: (2H, S), b1: (S,), w2: (S, 1), b2: (1,)  (b2 is unused -- it cancels under
    log_softmax).  Returns (B, T) f32 log-probabilities; fully-masked rows are NaN.

    batch_tile: target rows per grid step (rounded to a multiple of 128).  Aim for
    >= ~1-4 MiB of tbl_enc per block.  VMEM budget per step is roughly
      2*T*TB*H*itemsize (double-buffered tbl) + 3*T*TB*128*4 (lane-padded f32
      intermediates, since S < 128) + small terms
    -- use roughly half the v5e/v6e value on v7x (64 MiB physical VMEM).
    """
    del b2  # row-uniform scalar shift: exact no-op under log_softmax
    T, B, H = tbl_enc.shape
    S = w1.shape[1]
    cdt = q_enc.dtype                       # MXU compute dtype follows the inputs
    itemsize = int(jnp.dtype(cdt).itemsize)

    # ---- batch tile selection (no padding of any input) --------------------------
    if B < 2 * LANE:
        # Single (or full-dim) block; output store is a partial store but B is tiny.
        # NOTE: if B is not a multiple of the dtype's sublane pack (8 f32 / 16 bf16)
        # the (T,TB,H)->(T*TB,H) collapse relayouts in VMEM -- perf only.
        TB = B
    else:
        tb_target = max(LANE, (int(batch_tile) // LANE) * LANE)   # lane-dense tile
        tb_cap = max(LANE, (B // 2 // LANE) * LANE)               # >= 2 grid steps
        TB = min(tb_target, tb_cap)
    grid = (pl.cdiv(B, TB),)     # ragged tail -> partial last block (writes dropped)

    # ---- parameter prep (tiny arrays; no pass over the big activations) ----------
    tbl_enc = tbl_enc.astype(cdt)                       # no-op when dtypes match
    mask_t = jnp.transpose(tbl_mask).astype(jnp.int32)  # (T, B), tiny
    w1q = w1[:H, :].astype(cdt)                         # (H, S)
    w1t = w1[H:, :].astype(cdt)                         # (H, S)
    b1_2d = b1.reshape(1, S).astype(jnp.float32)        # (1, S)
    w2_row = w2.reshape(1, S).astype(jnp.float32)       # (1, S)

    # ---- VMEM budget (account for 128-lane padding of S-wide f32 intermediates) --
    SPAD = max(S, LANE)
    vmem_bytes = (
        2 * T * TB * H * itemsize            # tbl double-buffer
        + 2 * TB * H * itemsize              # q double-buffer
        + 2 * T * TB * 4 * 2                 # mask(i32) + out(f32) double-buffers
        + 3 * T * TB * SPAD * 4              # ht + hidden (+ slack), lane-padded f32
        + 2 * (2 * H * S * itemsize + 2 * S * 4)   # resident weights (double-buffered)
    )
    vmem_limit = int(max(32 << 20, min(64 << 20, int(1.5 * vmem_bytes) + (4 << 20))))

    # ---- cost estimate (kernel is HBM-bandwidth bound) ---------------------------
    cost = pl.CostEstimate(
        flops=int(2 * B * H * S * (T + 1) + 6 * B * T * S + 8 * B * T),
        transcendentals=int(B * T * S + 2 * B * T),
        bytes_accessed=int((T * B * H + B * H) * itemsize + 2 * T * B * 4
                           + 2 * H * S * itemsize + 2 * S * 4),
    )

    grid_spec = pltpu.PrefetchScalarGridSpec(
        num_scalar_prefetch=0,
        grid=grid,
        in_specs=[
            pl.BlockSpec((TB, H), lambda i: (i, 0)),          # q       (batch-tiled)
            pl.BlockSpec((T, TB, H), lambda i: (0, i, 0)),    # tbl     (T,B,H) layout
            pl.BlockSpec((T, TB), lambda i: (0, i)),          # mask    (T,B) layout
            pl.BlockSpec((H, S), lambda i: (0, 0)),           # W1[:H]  (resident)
            pl.BlockSpec((H, S), lambda i: (0, 0)),           # W1[H:]  (resident)
            pl.BlockSpec((1, S), lambda i: (0, 0)),           # b1      (resident)
            pl.BlockSpec((1, S), lambda i: (0, 0)),           # W2 row  (resident)
        ],
        out_specs=pl.BlockSpec((T, TB), lambda i: (0, i)),    # lane-dense output
    )

    out_tb = pl.pallas_call(
        match_scorer_kernel,
        out_shape=jax.ShapeDtypeStruct((T, B), jnp.float32),
        grid_spec=grid_spec,
        compiler_params=pltpu.CompilerParams(
            dimension_semantics=("parallel",),
            vmem_limit_bytes=vmem_limit),
        cost_estimate=cost,
    )(q_enc, tbl_enc, mask_t, w1q, w1t, b1_2d, w2_row)

    # Tiny (T, B) -> (B, T) transpose in the wrapper (keeps the PyTorch contract).
    return jnp.transpose(out_tb)


def match_scorer_ref(q_enc, tbl_enc, tbl_mask, w1, b1, w2, b2):
    """Pure-JAX f32 reference mirroring the PyTorch forward (eval mode)."""
    T, B, H = tbl_enc.shape
    q32 = q_enc.astype(jnp.float32)
    t32 = tbl_enc.astype(jnp.float32)
    w1f, b1f = w1.astype(jnp.float32), b1.astype(jnp.float32)
    w2f, b2f = w2.astype(jnp.float32), b2.astype(jnp.float32)
    q_exp = jnp.broadcast_to(q32[None, :, :], (T, B, H))
    feat = jnp.concatenate([q_exp, t32], axis=2).transpose(1, 0, 2)          # (B, T, 2H)
    hidden = jnp.tanh(feat @ w1f + b1f)
    score = (hidden @ w2f + b2f)[..., 0]                                     # (B, T)
    score = jnp.where(tbl_mask, -jnp.inf, score)
    return jax.nn.log_softmax(score, axis=1)


if __name__ == "__main__":
    # Small, deterministic shapes consistent with the module.
    H, S = 32, 16                      # rnn_size, score_size
    input_size = 2 * H

    key = jax.random.PRNGKey(0)
    k_q, k_t, k_m, k_w1, k_b1, k_w2, k_b2 = jax.random.split(key, 7)

    w1 = jax.random.normal(k_w1, (input_size, S), dtype=jnp.float32) * 0.1
    b1 = jax.random.normal(k_b1, (S,), dtype=jnp.float32) * 0.1
    w2 = jax.random.normal(k_w2, (S, 1), dtype=jnp.float32) * 0.1
    b2 = jax.random.normal(k_b2, (1,), dtype=jnp.float32) * 0.1

    def make_inputs(B, T, dtype):
        q = jax.random.normal(k_q, (B, H), dtype=jnp.float32)
        t = jax.random.normal(k_t, (T, B, H), dtype=jnp.float32)
        mask = jax.random.bernoulli(k_m, 0.2, (B, T))
        mask = mask.at[:, 0].set(False)     # keep every row partially unmasked (no NaN)
        return q.astype(dtype), t.astype(dtype), mask

    # --- 1) f32, small batch -> single full-dim block ------------------------------
    q, t, m = make_inputs(16, 8, jnp.float32)
    out = jax.block_until_ready(match_scorer(q, t, m, w1, b1, w2, b2))
    ref = jax.block_until_ready(match_scorer_ref(q, t, m, w1, b1, w2, b2))
    np.testing.assert_allclose(np.asarray(out), np.asarray(ref), rtol=1e-5, atol=1e-5)

    # --- 2) bf16 on the MXU (f32 accumulate), TB=128, grid=(2,), lane-dense stores --
    qb, tb, mb = make_inputs(256, 8, jnp.bfloat16)
    out_bf = jax.block_until_ready(
        match_scorer(qb, tb, mb, w1.astype(jnp.bfloat16), b1, w2, b2))
    ref_bf = jax.block_until_ready(
        match_scorer_ref(qb, tb, mb, w1.astype(jnp.bfloat16), b1, w2, b2))
    np.testing.assert_allclose(np.asarray(out_bf), np.asarray(ref_bf),
                               rtol=2e-4, atol=2e-4)

    # --- 3) f32 ragged batch (B=320, TB=128, grid=(3,)): partial last block, no
    #        HBM padding copy of tbl_enc --------------------------------------------
    qr, tr, mr = make_inputs(320, 8, jnp.float32)
    out_r = jax.block_until_ready(match_scorer(qr, tr, mr, w1, b1, w2, b2))
    ref_r = jax.block_until_ready(match_scorer_ref(qr, tr, mr, w1, b1, w2, b2))
    np.testing.assert_allclose(np.asarray(out_r), np.asarray(ref_r),
                               rtol=1e-5, atol=1e-5)

    print("KERNEL_OK")
</pallas_src>

<mosaic_0001>
module attributes {stable_mosaic.version = 11 : i64} {
  func.func @match_scorer_kernel(%arg0: i32, %arg1: memref<16x32xf32, #tpu.memory_space<vmem>>, %arg2: memref<8x16x32xf32, #tpu.memory_space<vmem>>, %arg3: memref<8x16xi32, #tpu.memory_space<vmem>>, %arg4: memref<32x16xf32, #tpu.memory_space<vmem>>, %arg5: memref<32x16xf32, #tpu.memory_space<vmem>>, %arg6: memref<1x16xf32, #tpu.memory_space<vmem>>, %arg7: memref<1x16xf32, #tpu.memory_space<vmem>>, %arg8: memref<8x16xf32, #tpu.memory_space<vmem>>) attributes {dimension_semantics = [#tpu.dimension_semantics<parallel>], iteration_bounds = array<i64: 1>, scalar_prefetch = 0 : i64, scratch_operands = 0 : i64, tpu.core_type = #tpu.core_type<tc>, window_params = [{transform_indices = @transform_0, window_bounds = array<i64: 16, 32>}, {transform_indices = @transform_1, window_bounds = array<i64: 8, 16, 32>}, {transform_indices = @transform_2, window_bounds = array<i64: 8, 16>}, {pipeline_mode = #tpu.pipeline_mode<synchronous>, transform_indices = @transform_3, window_bounds = array<i64: 32, 16>}, {pipeline_mode = #tpu.pipeline_mode<synchronous>, transform_indices = @transform_4, window_bounds = array<i64: 32, 16>}, {pipeline_mode = #tpu.pipeline_mode<synchronous>, transform_indices = @transform_5, window_bounds = array<i64: 1, 16>}, {pipeline_mode = #tpu.pipeline_mode<synchronous>, transform_indices = @transform_6, window_bounds = array<i64: 1, 16>}, {transform_indices = @transform_7, window_bounds = array<i64: 8, 16>}]} {
    %c0 = arith.constant 0 : index
    %c0_0 = arith.constant 0 : index
    %0 = vector.load %arg1[%c0, %c0_0] : memref<16x32xf32, #tpu.memory_space<vmem>>, vector<16x32xf32>
    %c0_1 = arith.constant 0 : index
    %c0_2 = arith.constant 0 : index
    %1 = vector.load %arg4[%c0_1, %c0_2] : memref<32x16xf32, #tpu.memory_space<vmem>>, vector<32x16xf32>
    %cst = arith.constant dense<0.000000e+00> : vector<16x16xf32>
    %2 = tpu.matmul %0, %1, %cst {dimension_numbers = #tpu.dot_dimension_numbers<[1], [0], [0], [1], [0, 0, 1, 1], [], []>} : vector<16x32xf32>, vector<32x16xf32>, vector<16x16xf32> -> vector<16x16xf32>
    %c0_3 = arith.constant 0 : index
    %c0_4 = arith.constant 0 : index
    %c0_5 = arith.constant 0 : index
    %3 = vector.load %arg2[%c0_3, %c0_4, %c0_5] : memref<8x16x32xf32, #tpu.memory_space<vmem>>, vector<8x16x32xf32>
    %4 = vector.shape_cast %3 : vector<8x16x32xf32> to vector<128x32xf32>
    %c0_6 = arith.constant 0 : index
    %c0_7 = arith.constant 0 : index
    %5 = vector.load %arg5[%c0_6, %c0_7] : memref<32x16xf32, #tpu.memory_space<vmem>>, vector<32x16xf32>
    %cst_8 = arith.constant dense<0.000000e+00> : vector<128x16xf32>
    %6 = tpu.matmul %4, %5, %cst_8 {dimension_numbers = #tpu.dot_dimension_numbers<[1], [0], [0], [1], [0, 0, 1, 1], [], []>} : vector<128x32xf32>, vector<32x16xf32>, vector<128x16xf32> -> vector<128x16xf32>
    %7 = vector.shape_cast %6 : vector<128x16xf32> to vector<8x16x16xf32>
    %8 = vector.shape_cast %2 : vector<16x16xf32> to vector<1x16x16xf32>
    %9 = vector.broadcast %8 : vector<1x16x16xf32> to vector<8x16x16xf32>
    %10 = arith.addf %7, %9 : vector<8x16x16xf32>
    %c0_9 = arith.constant 0 : index
    %c0_10 = arith.constant 0 : index
    %11 = vector.load %arg6[%c0_9, %c0_10] : memref<1x16xf32, #tpu.memory_space<vmem>>, vector<1x16xf32>
    %12 = vector.shape_cast %11 : vector<1x16xf32> to vector<1x1x16xf32>
    %13 = vector.broadcast %12 : vector<1x1x16xf32> to vector<8x16x16xf32>
    %14 = arith.addf %10, %13 : vector<8x16x16xf32>
    %15 = math.tanh %14 : vector<8x16x16xf32>
    %c0_11 = arith.constant 0 : index
    %c0_12 = arith.constant 0 : index
    %16 = vector.load %arg7[%c0_11, %c0_12] : memref<1x16xf32, #tpu.memory_space<vmem>>, vector<1x16xf32>
    %17 = vector.shape_cast %16 : vector<1x16xf32> to vector<1x1x16xf32>
    %18 = vector.broadcast %17 : vector<1x1x16xf32> to vector<8x16x16xf32>
    %19 = arith.mulf %15, %18 : vector<8x16x16xf32>
    %cst_13 = arith.constant dense<0.000000e+00> : vector<8x16xf32>
    %20 = vector.multi_reduction <add>, %19, %cst_13 [2] : vector<8x16x16xf32> to vector<8x16xf32>
    %c0_14 = arith.constant 0 : index
    %c0_15 = arith.constant 0 : index
    %21 = vector.load %arg3[%c0_14, %c0_15] : memref<8x16xi32, #tpu.memory_space<vmem>>, vector<8x16xi32>
    %c0_i32 = arith.constant 0 : i32
    %22 = vector.broadcast %c0_i32 : i32 to vector<8x16xi32>
    %23 = arith.cmpi ne, %21, %22 : vector<8x16xi32>
    %cst_16 = arith.constant 0xFF800000 : f32
    %24 = vector.broadcast %cst_16 : f32 to vector<8x16xf32>
    %25 = arith.select %23, %24, %20 : vector<8x16xi1>, vector<8x16xf32>
    %cst_17 = arith.constant dense<0xFF800000> : vector<16xf32>
    %26 = vector.multi_reduction <maximumf>, %25, %cst_17 [0] : vector<8x16xf32> to vector<16xf32>
    %27 = vector.shape_cast %26 : vector<16xf32> to vector<1x16xf32>
    %28 = vector.broadcast %27 : vector<1x16xf32> to vector<8x16xf32>
    %29 = arith.subf %25, %28 : vector<8x16xf32>
    %30 = math.exp %29 : vector<8x16xf32>
    %cst_18 = arith.constant dense<0.000000e+00> : vector<16xf32>
    %31 = vector.multi_reduction <add>, %30, %cst_18 [0] : vector<8x16xf32> to vector<16xf32>
    %32 = vector.shape_cast %31 : vector<16xf32> to vector<1x16xf32>
    %33 = math.log %32 : vector<1x16xf32>
    %34 = arith.addf %33, %27 : vector<1x16xf32>
    %35 = vector.broadcast %34 : vector<1x16xf32> to vector<8x16xf32>
    %36 = arith.subf %25, %35 : vector<8x16xf32>
    %c0_19 = arith.constant 0 : index
    %c0_20 = arith.constant 0 : index
    %37 = vector.load %arg8[%c0_19, %c0_20] : memref<8x16xf32, #tpu.memory_space<vmem>>, vector<8x16xf32>
    tpu.vector_store %arg8[%c0_19, %c0_20], %36 {strides = array<i32>} : memref<8x16xf32, #tpu.memory_space<vmem>>, vector<8x16xf32>,
    return
  }
  func.func @transform_0(%arg0: i32) -> (i32, i32) {
    %c0_i32 = arith.constant 0 : i32
    %c0_i32_0 = arith.constant 0 : i32
    return %arg0, %c0_i32 : i32, i32
  }
  func.func @transform_1(%arg0: i32) -> (i32, i32, i32) {
    %c0_i32 = arith.constant 0 : i32
    %c0_i32_0 = arith.constant 0 : i32
    %c0_i32_1 = arith.constant 0 : i32
    return %c0_i32, %arg0, %c0_i32_0 : i32, i32, i32
  }
  func.func @transform_2(%arg0: i32) -> (i32, i32) {
    %c0_i32 = arith.constant 0 : i32
    %c0_i32_0 = arith.constant 0 : i32
    return %c0_i32, %arg0 : i32, i32
  }
  func.func @transform_3(%arg0: i32) -> (i32, i32) {
    %c0_i32 = arith.constant 0 : i32
    %c0_i32_0 = arith.constant 0 : i32
    %c0_i32_1 = arith.constant 0 : i32
    return %c0_i32, %c0_i32_0 : i32, i32
  }
  func.func @transform_4(%arg0: i32) -> (i32, i32) {
    %c0_i32 = arith.constant 0 : i32
    %c0_i32_0 = arith.constant 0 : i32
    %c0_i32_1 = arith.constant 0 : i32
    return %c0_i32, %c0_i32_0 : i32, i32
  }
  func.func @transform_5(%arg0: i32) -> (i32, i32) {
    %c0_i32 = arith.constant 0 : i32
    %c0_i32_0 = arith.constant 0 : i32
    %c0_i32_1 = arith.constant 0 : i32
    return %c0_i32, %c0_i32_0 : i32, i32
  }
  func.func @transform_6(%arg0: i32) -> (i32, i32) {
    %c0_i32 = arith.constant 0 : i32
    %c0_i32_0 = arith.constant 0 : i32
    %c0_i32_1 = arith.constant 0 : i32
    return %c0_i32, %c0_i32_0 : i32, i32
  }
  func.func @transform_7(%arg0: i32) -> (i32, i32) {
    %c0_i32 = arith.constant 0 : i32
    %c0_i32_0 = arith.constant 0 : i32
    return %c0_i32, %arg0 : i32, i32
  }
}

</mosaic_0001>

<llo_original>
// kernel: tpu_custom_call.1
$region0: #{tpu_custom_call.1}
  #allocation0 [shape = 'u32[]', space=smem, size = 0x4, offset = 0x4, fixed_abs, tag = 'smem constant byte address 0x4 - core index']
  #allocation1 [shape = 'u32[144,128]{1,0:T(1,128)}', space=vmem, size = 0x12000, scoped, tag = 'internal scratch']
  %s0 = inlined_call_operand.vmem [shape: f32[16,32], index: 0, kind: input, shape index: {}]
  %s1 = inlined_call_operand.hbm [shape: f32[8,16,32], index: 1, kind: input, shape index: {}]
  %s2 = inlined_call_operand.vmem [shape: s32[8,16], index: 2, kind: input, shape index: {}]
  %s3 = inlined_call_operand.vmem [shape: f32[32,16], index: 3, kind: input, shape index: {}]
  %s4 = inlined_call_operand.vmem [shape: f32[32,16], index: 4, kind: input, shape index: {}]
  %s5 = inlined_call_operand.vmem [shape: f32[1,16], index: 5, kind: input, shape index: {}]
  %s6 = inlined_call_operand.vmem [shape: f32[1,16], index: 6, kind: input, shape index: {}]
  %s7 = inlined_call_operand.hbm [shape: f32[8,16], index: 7, kind: output, shape index: {}]
  %s8 = sld [smem:[#allocation0]]
  $region42: #{tpu_custom_call.1} parent=0
    _
  %s10 = ssub.s32 1, %s8
  %s11 = scalar_select 0, %s10, %s8
  $region1: #{tpu_custom_call.1} parent=0
    #allocation2 [shape = 'u8[65536]{0}', space=vmem, size = 0x10000, scoped, tag = 'input window, operand 1, single buffered']
    #allocation3 [shape = 's32[1]{0}', space=sflag, size = 0x4, scoped, tag = 'scoped memory for tpu_custom_call.1']
    #allocation4 [shape = 's32[1]{0}', space=sflag, size = 0x4, scoped, tag = 'scoped memory for tpu_custom_call.1']
    #allocation5 [shape = 'u8[4096]{0}', space=vmem, size = 0x1000, scoped, tag = 'output window, operand 0, single buffered']
    %12 = vsyncpa [#allocation3], 0
    %13 = vsyncpa [#allocation4], 0
    // Predicated region
    $region2: #{tpu_custom_call.1} parent=1 // pred_check
      _
    $region3: #{tpu_custom_call.1} parent=1 // pred_check_branch
      %15 = sbr.rel (0) target = $region5
    $region4: #{tpu_custom_call.1} parent=1 // pred_region
      _
    $region5: #{tpu_custom_call.1} parent=1 // pred_fallthru
      _
    // Predicated region
    $region6: #{tpu_custom_call.1} parent=1 // pred_check
      _
    $region7: #{tpu_custom_call.1} parent=1 // pred_check_branch
      %17 = sbr.rel (0) target = $region9
    $region8: #{tpu_custom_call.1} parent=1 // pred_region
      %s19 = ssub.s32 2048, 2048
      %20 = vsyncadd [#allocation3], %s19
      %s21 = sshll.u32 [#allocation2], 4
      %s22 = int_to_ptr.vmem [resolvable:$true] %s21
      %27 = dma.hbm_to_vmem [thread:$0]  %s1, 2048, %s22, [#allocation3], 128, 128, 8
    $region9: #{tpu_custom_call.1} parent=1 // pred_fallthru
      _
    // Predicated region
    $region10: #{tpu_custom_call.1} parent=1 // pred_check
      _
    $region11: #{tpu_custom_call.1} parent=1 // pred_check_branch
      %29 = sbr.rel (0) target = $region13
    $region12: #{tpu_custom_call.1} parent=1 // pred_region
      _
    $region13: #{tpu_custom_call.1} parent=1 // pred_fallthru
      _
    // Predicated region
    $region14: #{tpu_custom_call.1} parent=1 // pred_check
      _
    $region15: #{tpu_custom_call.1} parent=1 // pred_check_branch
      %31 = sbr.rel (0) target = $region17
    $region16: #{tpu_custom_call.1} parent=1 // pred_region
      _
    $region17: #{tpu_custom_call.1} parent=1 // pred_fallthru
      _
    // Predicated region
    $region18: #{tpu_custom_call.1} parent=1 // pred_check
      _
    $region19: #{tpu_custom_call.1} parent=1 // pred_check_branch
      %33 = sbr.rel (0) target = $region21
    $region20: #{tpu_custom_call.1} parent=1 // pred_region
      _
    $region21: #{tpu_custom_call.1} parent=1 // pred_fallthru
      _
    // Predicated region
    $region22: #{tpu_custom_call.1} parent=1 // pred_check
      _
    $region23: #{tpu_custom_call.1} parent=1 // pred_check_branch
      %35 = sbr.rel (0) target = $region25
    $region24: #{tpu_custom_call.1} parent=1 // pred_region
      _
    $region25: #{tpu_custom_call.1} parent=1 // pred_fallthru
      _
    // Predicated region
    $region26: #{tpu_custom_call.1} parent=1 // pred_check
      _
    $region27: #{tpu_custom_call.1} parent=1 // pred_check_branch
      %37 = sbr.rel (0) target = $region29
    $region28: #{tpu_custom_call.1} parent=1 // pred_region
      _
    $region29: #{tpu_custom_call.1} parent=1 // pred_fallthru
      _
    // Predicated region
    $region30: #{tpu_custom_call.1} parent=1 // pred_check
      _
    $region31: #{tpu_custom_call.1} parent=1 // pred_check_branch
      %39 = sbr.rel (0) target = $region33
    $region32: #{tpu_custom_call.1} parent=1 // pred_region
      %40 = dma.done [#allocation3], 2048
    $region33: #{tpu_custom_call.1} parent=1 // pred_fallthru
      _
    %v41 = vld [vmem:[%s0] sm:$0xff]
    %v42 = vld [vmem:[%s0 + $0x8] sm:$0xff]
    %v43 = vld [vmem:[%s3] sm:$0xff]
    %v44 = vld [vmem:[%s3 + $0x8] sm:$0xff]
    %v45 = vld [vmem:[%s3 + $0x10] sm:$0xff]
    %v46 = vld [vmem:[%s3 + $0x18] sm:$0xff]
    %vm47 = vcmask 261120
    %v49 = vsel %vm47, %v41, 0
    %v52 = vsel %vm47, %v42, 0
    %54 = vmatprep.subr.mxu0 0.0
    %55 = vmatpush1.msra.mxu0 %v43
    %56 = vmatprep.subr.mxu0 0.0
    %57 = vmatpush1.msra.mxu0 %v44
    %58 = vmatprep.subr.mxu0 0.0
    %59 = vmatpush1.msra.mxu0 %v45
    %60 = vmatprep.subr.mxu0 0.0
    %61 = vmatpush1.msra.mxu0 %v46
    %62 = vmatprep.subr.mxu0 0.0
    %63 = vmatpush1.msra.mxu0 0.0
    %64 = vmatprep.subr.mxu0 0.0
    %65 = vmatpush1.msra.mxu0 0.0
    %66 = vmatprep.subr.mxu0 0.0
    %67 = vmatpush1.msra.mxu0 0.0
    %68 = vmatprep.subr.mxu0 0.0
    %69 = vmatpush1.msra.mxu0 0.0
    %70 = vmatprep.subr.mxu0 0.0
    %71 = vmatpush1.msra.mxu0 0.0
    %72 = vmatprep.subr.mxu0 0.0
    %73 = vmatpush1.msra.mxu0 0.0
    %74 = vmatprep.subr.mxu0 0.0
    %75 = vmatpush1.msra.mxu0 0.0
    %76 = vmatprep.subr.mxu0 0.0
    %77 = vmatpush1.msra.mxu0 0.0
    %78 = vmatprep.subr.mxu0 0.0
    %79 = vmatpush1.msra.mxu0 0.0
    %80 = vmatprep.subr.mxu0 0.0
    %81 = vmatpush1.msra.mxu0 0.0
    %82 = vmatprep.subr.mxu0 0.0
    %83 = vmatpush1.msra.mxu0 0.0
    %84 = vmatprep.subr.mxu0 0.0
    %85 = vmatpush1.msra.mxu0 0.0
    %86 = vmatprep.subr.mxu0 0.0
    %87 = vmatpush1.msra.mxu0 0.0
    %88 = vmatprep.subr.mxu0 0.0
    %89 = vmatpush1.msra.mxu0 0.0
    %90 = vmatprep.subr.mxu0 0.0
    %91 = vmatpush1.msra.mxu0 0.0
    %92 = vmatprep.subr.mxu0 0.0
    %93 = vmatpush1.msra.mxu0 0.0
    %94 = vmatprep.subr.mxu0 0.0
    %95 = vmatpush1.msra.mxu0 0.0
    %96 = vmatprep.subr.mxu0 0.0
    %97 = vmatpush1.msra.mxu0 0.0
    %98 = vmatprep.subr.mxu0 0.0
    %99 = vmatpush1.msra.mxu0 0.0
    %100 = vmatprep.subr.mxu0 0.0
    %101 = vmatpush1.msra.mxu0 0.0
    %102 = vmatprep.subr.mxu0 0.0
    %103 = vmatpush1.msra.mxu0 0.0
    %104 = vmatprep.subr.mxu0 0.0
    %105 = vmatpush1.msra.mxu0 0.0
    %106 = vmatprep.subr.mxu0 0.0
    %107 = vmatpush1.msra.mxu0 0.0
    %108 = vmatprep.subr.mxu0 0.0
    %109 = vmatpush1.msra.mxu0 0.0
    %110 = vmatprep.subr.mxu0 0.0
    %111 = vmatpush1.msra.mxu0 0.0
    %112 = vmatprep.subr.mxu0 0.0
    %113 = vmatpush1.msra.mxu0 0.0
    %114 = vmatprep.subr.mxu0 0.0
    %115 = vmatpush1.msra.mxu0 0.0
    %116 = vmatprep.subr.mxu0 0.0
    %117 = vmatpush1.msra.mxu0 0.0
    %118 = vmatprep.mubr.f32.mxu0 0.0
    %119 = vmatmul.mubr.f32.gmra.mrb[0].mxu0 %v49
    %v120 = vpop.f32.mrb[0].mxu0
    %v121 = vadd.f32 0.0, %v120
    %v122 = vpop.f32.mrb[0].mxu0
    %123 = vmatprep.mubr.f32.mxu0 0.0
    %124 = vmatmul.mubr.f32.gmra.mrb[0].mxu0 %v52
    %v125 = vpop.f32.mrb[0].mxu0
    %v126 = vadd.f32 0.0, %v125
    %v127 = vpop.f32.mrb[0].mxu0
    %128 = vdwg.mxu0
    %v129 = vld [vmem:[#allocation2] sm:$0xff]
    %v130 = vld [vmem:[#allocation2 + $0x8] sm:$0xff]
    %v131 = vld [vmem:[#allocation2 + $0x10] sm:$0xff]
    %v132 = vld [vmem:[#allocation2 + $0x18] sm:$0xff]
    %v133 = vld [vmem:[#allocation2 + $0x20] sm:$0xff]
    %v134 = vld [vmem:[#allocation2 + $0x28] sm:$0xff]
    %v135 = vld [vmem:[#allocation2 + $0x30] sm:$0xff]
    %v136 = vld [vmem:[#allocation2 + $0x38] sm:$0xff]
    %v137 = vld [vmem:[#allocation2 + $0x40] sm:$0xff]
    %v138 = vld [vmem:[#allocation2 + $0x48] sm:$0xff]
    %v139 = vld [vmem:[#allocation2 + $0x50] sm:$0xff]
    %v140 = vld [vmem:[#allocation2 + $0x58] sm:$0xff]
    %v141 = vld [vmem:[#allocation2 + $0x60] sm:$0xff]
    %v142 = vld [vmem:[#allocation2 + $0x68] sm:$0xff]
    %v143 = vld [vmem:[#allocation2 + $0x70] sm:$0xff]
    %v144 = vld [vmem:[#allocation2 + $0x78] sm:$0xff]
    %v145 = vld [vmem:[%s4] sm:$0xff]
    %v146 = vld [vmem:[%s4 + $0x8] sm:$0xff]
    %v147 = vld [vmem:[%s4 + $0x10] sm:$0xff]
    %v148 = vld [vmem:[%s4 + $0x18] sm:$0xff]
    %v150 = vsel %vm47, %v129, 0
    %v153 = vsel %vm47, %v130, 0
    %v156 = vsel %vm47, %v131, 0
    %v159 = vsel %vm47, %v132, 0
    %v162 = vsel %vm47, %v133, 0
    %v165 = vsel %vm47, %v134, 0
    %v168 = vsel %vm47, %v135, 0
    %v171 = vsel %vm47, %v136, 0
    %v174 = vsel %vm47, %v137, 0
    %v177 = vsel %vm47, %v138, 0
    %v180 = vsel %vm47, %v139, 0
    %v183 = vsel %vm47, %v140, 0
    %v186 = vsel %vm47, %v141, 0
    %v189 = vsel %vm47, %v142, 0
    %v192 = vsel %vm47, %v143, 0
    %v195 = vsel %vm47, %v144, 0
    %197 = vmatprep.subr.mxu0 0.0
    %198 = vmatpush1.msra.mxu0 %v145
    %199 = vmatprep.subr.mxu0 0.0
    %200 = vmatpush1.msra.mxu0 %v146
    %201 = vmatprep.subr.mxu0 0.0
    %202 = vmatpush1.msra.mxu0 %v147
    %203 = vmatprep.subr.mxu0 0.0
    %204 = vmatpush1.msra.mxu0 %v148
    %205 = vmatprep.subr.mxu0 0.0
    %206 = vmatpush1.msra.mxu0 0.0
    %207 = vmatprep.subr.mxu0 0.0
    %208 = vmatpush1.msra.mxu0 0.0
    %209 = vmatprep.subr.mxu0 0.0
    %210 = vmatpush1.msra.mxu0 0.0
    %211 = vmatprep.subr.mxu0 0.0
    %212 = vmatpush1.msra.mxu0 0.0
    %213 = vmatprep.subr.mxu0 0.0
    %214 = vmatpush1.msra.mxu0 0.0
    %215 = vmatprep.subr.mxu0 0.0
    %216 = vmatpush1.msra.mxu0 0.0
    %217 = vmatprep.subr.mxu0 0.0
    %218 = vmatpush1.msra.mxu0 0.0
    %219 = vmatprep.subr.mxu0 0.0
    %220 = vmatpush1.msra.mxu0 0.0
    %221 = vmatprep.subr.mxu0 0.0
    %222 = vmatpush1.msra.mxu0 0.0
    %223 = vmatprep.subr.mxu0 0.0
    %224 = vmatpush1.msra.mxu0 0.0
    %225 = vmatprep.subr.mxu0 0.0
    %226 = vmatpush1.msra.mxu0 0.0
    %227 = vmatprep.subr.mxu0 0.0
    %228 = vmatpush1.msra.mxu0 0.0
    %229 = vmatprep.subr.mxu0 0.0
    %230 = vmatpush1.msra.mxu0 0.0
    %231 = vmatprep.subr.mxu0 0.0
    %232 = vmatpush1.msra.mxu0 0.0
    %233 = vmatprep.subr.mxu0 0.0
    %234 = vmatpush1.msra.mxu0 0.0
    %235 = vmatprep.subr.mxu0 0.0
    %236 = vmatpush1.msra.mxu0 0.0
    %237 = vmatprep.subr.mxu0 0.0
    %238 = vmatpush1.msra.mxu0 0.0
    %239 = vmatprep.subr.mxu0 0.0
    %240 = vmatpush1.msra.mxu0 0.0
    %241 = vmatprep.subr.mxu0 0.0
    %242 = vmatpush1.msra.mxu0 0.0
    %243 = vmatprep.subr.mxu0 0.0
    %244 = vmatpush1.msra.mxu0 0.0
    %245 = vmatprep.subr.mxu0 0.0
    %246 = vmatpush1.msra.mxu0 0.0
    %247 = vmatprep.subr.mxu0 0.0
    %248 = vmatpush1.msra.mxu0 0.0
    %249 = vmatprep.subr.mxu0 0.0
    %250 = vmatpush1.msra.mxu0 0.0
    %251 = vmatprep.subr.mxu0 0.0
    %252 = vmatpush1.msra.mxu0 0.0
    %253 = vmatprep.subr.mxu0 0.0
    %254 = vmatpush1.msra.mxu0 0.0
    %255 = vmatprep.subr.mxu0 0.0
    %256 = vmatpush1.msra.mxu0 0.0
    %257 = vmatprep.subr.mxu0 0.0
    %258 = vmatpush1.msra.mxu0 0.0
    %259 = vmatprep.subr.mxu0 0.0
    %260 = vmatpush1.msra.mxu0 0.0
    %261 = vmatprep.mubr.f32.mxu0 0.0
    %262 = vmatmul.mubr.f32.gmra.mrb[0].mxu0 %v150
    %v263 = vpop.f32.mrb[0].mxu0
    %v264 = vadd.f32 0.0, %v263
    %v265 = vpop.f32.mrb[0].mxu0
    %266 = vmatprep.mubr.f32.mxu0 0.0
    %267 = vmatmul.mubr.f32.gmra.mrb[0].mxu0 %v153
    %v268 = vpop.f32.mrb[0].mxu0
    %v269 = vadd.f32 0.0, %v268
    %v270 = vpop.f32.mrb[0].mxu0
    %271 = vmatprep.mubr.f32.mxu0 0.0
    %272 = vmatmul.mubr.f32.gmra.mrb[0].mxu0 %v156
    %v273 = vpop.f32.mrb[0].mxu0
    %v274 = vadd.f32 0.0, %v273
    %v275 = vpop.f32.mrb[0].mxu0
    %276 = vmatprep.mubr.f32.mxu0 0.0
    %277 = vmatmul.mubr.f32.gmra.mrb[0].mxu0 %v159
    %v278 = vpop.f32.mrb[0].mxu0
    %v279 = vadd.f32 0.0, %v278
    %v280 = vpop.f32.mrb[0].mxu0
    %281 = vmatprep.mubr.f32.mxu0 0.0
    %282 = vmatmul.mubr.f32.gmra.mrb[0].mxu0 %v162
    %v283 = vpop.f32.mrb[0].mxu0
    %v284 = vadd.f32 0.0, %v283
    %v285 = vpop.f32.mrb[0].mxu0
    %286 = vmatprep.mubr.f32.mxu0 0.0
    %287 = vmatmul.mubr.f32.gmra.mrb[0].mxu0 %v165
    %v288 = vpop.f32.mrb[0].mxu0
    %v289 = vadd.f32 0.0, %v288
    %v290 = vpop.f32.mrb[0].mxu0
    %291 = vmatprep.mubr.f32.mxu0 0.0
    %292 = vmatmul.mubr.f32.gmra.mrb[0].mxu0 %v168
    %v293 = vpop.f32.mrb[0].mxu0
    %v294 = vadd.f32 0.0, %v293
    %v295 = vpop.f32.mrb[0].mxu0
    %296 = vmatprep.mubr.f32.mxu0 0.0
    %297 = vmatmul.mubr.f32.gmra.mrb[0].mxu0 %v171
    %v298 = vpop.f32.mrb[0].mxu0
    %v299 = vadd.f32 0.0, %v298
    %v300 = vpop.f32.mrb[0].mxu0
    %301 = vmatprep.mubr.f32.mxu0 0.0
    %302 = vmatmul.mubr.f32.gmra.mrb[0].mxu0 %v174
    %v303 = vpop.f32.mrb[0].mxu0
    %v304 = vadd.f32 0.0, %v303
    %v305 = vpop.f32.mrb[0].mxu0
    %306 = vmatprep.mubr.f32.mxu0 0.0
    %307 = vmatmul.mubr.f32.gmra.mrb[0].mxu0 %v177
    %v308 = vpop.f32.mrb[0].mxu0
    %v309 = vadd.f32 0.0, %v308
    %v310 = vpop.f32.mrb[0].mxu0
    %311 = vmatprep.mubr.f32.mxu0 0.0
    %312 = vmatmul.mubr.f32.gmra.mrb[0].mxu0 %v180
    %v313 = vpop.f32.mrb[0].mxu0
    %v314 = vadd.f32 0.0, %v313
    %v315 = vpop.f32.mrb[0].mxu0
    %316 = vmatprep.mubr.f32.mxu0 0.0
    %317 = vmatmul.mubr.f32.gmra.mrb[0].mxu0 %v183
    %v318 = vpop.f32.mrb[0].mxu0
    %v319 = vadd.f32 0.0, %v318
    %v320 = vpop.f32.mrb[0].mxu0
    %321 = vmatprep.mubr.f32.mxu0 0.0
    %322 = vmatmul.mubr.f32.gmra.mrb[0].mxu0 %v186
    %v323 = vpop.f32.mrb[0].mxu0
    %v324 = vadd.f32 0.0, %v323
    %v325 = vpop.f32.mrb[0].mxu0
    %326 = vmatprep.mubr.f32.mxu0 0.0
    %327 = vmatmul.mubr.f32.gmra.mrb[0].mxu0 %v189
    %v328 = vpop.f32.mrb[0].mxu0
    %v329 = vadd.f32 0.0, %v328
    %v330 = vpop.f32.mrb[0].mxu0
    %331 = vmatprep.mubr.f32.mxu0 0.0
    %332 = vmatmul.mubr.f32.gmra.mrb[0].mxu0 %v192
    %v333 = vpop.f32.mrb[0].mxu0
    %v334 = vadd.f32 0.0, %v333
    %v335 = vpop.f32.mrb[0].mxu0
    %336 = vmatprep.mubr.f32.mxu0 0.0
    %337 = vmatmul.mubr.f32.gmra.mrb[0].mxu0 %v195
    %v338 = vpop.f32.mrb[0].mxu0
    %v339 = vadd.f32 0.0, %v338
    %v340 = vpop.f32.mrb[0].mxu0
    %341 = vdwg.mxu0
    %v342 = vadd.f32 %v264, %v121
    %v343 = vadd.f32 %v269, %v126
    %v344 = vadd.f32 %v274, %v121
    %v345 = vadd.f32 %v279, %v126
    %v346 = vadd.f32 %v284, %v121
    %v347 = vadd.f32 %v289, %v126
    %v348 = vadd.f32 %v294, %v121
    %v349 = vadd.f32 %v299, %v126
    %v350 = vadd.f32 %v304, %v121
    %v351 = vadd.f32 %v309, %v126
    %v352 = vadd.f32 %v314, %v121
    %v353 = vadd.f32 %v319, %v126
    %v354 = vadd.f32 %v324, %v121
    %v355 = vadd.f32 %v329, %v126
    %v356 = vadd.f32 %v334, %v121
    %v357 = vadd.f32 %v339, %v126
    %v358 = vld [vmem:[%s5] sm:$0x1]
    %v360 = vlaneseq
    %v361 = vshrl.u32 %v360, 7
    %v362 = vsub.s32 0, %v361
    %v363 = vrot.slane %v358, %v362
    %v365 = vadd.f32 %v342, %v363
    %v366 = vadd.f32 %v343, %v363
    %v367 = vadd.f32 %v344, %v363
    %v368 = vadd.f32 %v345, %v363
    %v369 = vadd.f32 %v346, %v363
    %v370 = vadd.f32 %v347, %v363
    %v371 = vadd.f32 %v348, %v363
    %v372 = vadd.f32 %v349, %v363
    %v373 = vadd.f32 %v350, %v363
    %v374 = vadd.f32 %v351, %v363
    %v375 = vadd.f32 %v352, %v363
    %v376 = vadd.f32 %v353, %v363
    %v377 = vadd.f32 %v354, %v363
    %v378 = vadd.f32 %v355, %v363
    %v379 = vadd.f32 %v356, %v363
    %v380 = vadd.f32 %v357, %v363
    %v381 = vtanh.pop %v365
    %v382 = vtanh.pop %v366
    %v383 = vtanh.pop %v367
    %v384 = vtanh.pop %v368
    %v385 = vtanh.pop %v369
    %v386 = vtanh.pop %v370
    %v387 = vtanh.pop %v371
    %v388 = vtanh.pop %v372
    %v389 = vtanh.pop %v373
    %v390 = vtanh.pop %v374
    %v391 = vtanh.pop %v375
    %v392 = vtanh.pop %v376
    %v393 = vtanh.pop %v377
    %v394 = vtanh.pop %v378
    %v395 = vtanh.pop %v379
    %v396 = vtanh.pop %v380
    %v397 = vld [vmem:[%s6] sm:$0x1]
    %v399 = vlaneseq
    %v400 = vshrl.u32 %v399, 7
    %v401 = vsub.s32 0, %v400
    %v402 = vrot.slane %v397, %v401
    %v404 = vmul.f32 %v381, %v402
    %v405 = vmul.f32 %v382, %v402
    %v406 = vmul.f32 %v383, %v402
    %v407 = vmul.f32 %v384, %v402
    %v408 = vmul.f32 %v385, %v402
    %v409 = vmul.f32 %v386, %v402
    %v410 = vmul.f32 %v387, %v402
    %v411 = vmul.f32 %v388, %v402
    %v412 = vmul.f32 %v389, %v402
    %v413 = vmul.f32 %v390, %v402
    %v414 = vmul.f32 %v391, %v402
    %v415 = vmul.f32 %v392, %v402
    %v416 = vmul.f32 %v393, %v402
    %v417 = vmul.f32 %v394, %v402
    %v418 = vmul.f32 %v395, %v402
    %v419 = vmul.f32 %v396, %v402
    %vm420 = vcmask 130048
    %v421 = vsel %vm420, %v404, 0.0
    %422 = vadd.xlane.f32.xlu0 %v421
    %v423 = vpop.xlane.xlu0 %422
    %v424 = vsel %vm420, %v405, 0.0
    %425 = vadd.xlane.f32.xlu0 %v424
    %v426 = vpop.xlane.xlu0 %425
    %v427 = vsel %vm420, %v406, 0.0
    %428 = vadd.xlane.f32.xlu0 %v427
    %v429 = vpop.xlane.xlu0 %428
    %v430 = vsel %vm420, %v407, 0.0
    %431 = vadd.xlane.f32.xlu0 %v430
    %v432 = vpop.xlane.xlu0 %431
    %v433 = vsel %vm420, %v408, 0.0
    %434 = vadd.xlane.f32.xlu0 %v433
    %v435 = vpop.xlane.xlu0 %434
    %v436 = vsel %vm420, %v409, 0.0
    %437 = vadd.xlane.f32.xlu0 %v436
    %v438 = vpop.xlane.xlu0 %437
    %v439 = vsel %vm420, %v410, 0.0
    %440 = vadd.xlane.f32.xlu0 %v439
    %v441 = vpop.xlane.xlu0 %440
    %v442 = vsel %vm420, %v411, 0.0
    %443 = vadd.xlane.f32.xlu0 %v442
    %v444 = vpop.xlane.xlu0 %443
    %v445 = vsel %vm420, %v412, 0.0
    %446 = vadd.xlane.f32.xlu0 %v445
    %v447 = vpop.xlane.xlu0 %446
    %v448 = vsel %vm420, %v413, 0.0
    %449 = vadd.xlane.f32.xlu0 %v448
    %v450 = vpop.xlane.xlu0 %449
    %v451 = vsel %vm420, %v414, 0.0
    %452 = vadd.xlane.f32.xlu0 %v451
    %v453 = vpop.xlane.xlu0 %452
    %v454 = vsel %vm420, %v415, 0.0
    %455 = vadd.xlane.f32.xlu0 %v454
    %v456 = vpop.xlane.xlu0 %455
    %v457 = vsel %vm420, %v416, 0.0
    %458 = vadd.xlane.f32.xlu0 %v457
    %v459 = vpop.xlane.xlu0 %458
    %v460 = vsel %vm420, %v417, 0.0
    %461 = vadd.xlane.f32.xlu0 %v460
    %v462 = vpop.xlane.xlu0 %461
    %v463 = vsel %vm420, %v418, 0.0
    %464 = vadd.xlane.f32.xlu0 %v463
    %v465 = vpop.xlane.xlu0 %464
    %v466 = vsel %vm420, %v419, 0.0
    %467 = vadd.xlane.f32.xlu0 %v466
    %v468 = vpop.xlane.xlu0 %467
    %v469 = vld [vmem:[%s2] sm:$0xff]
    %vm470 = vcmp.ne.s32.totalorder %v469, 0
    %v487 = vlaneseq
    %v488 = vand.u32 %v487, 127
    %v489 = vlaneseq
    %v490 = vshrl.u32 %v489, 7
    %v491 = vsub.s32 %v488, %v490
    %v492 = vrot.slane %v423, %v491
    %v493 = vadd.s32 %v488, 4294967288
    %v494 = vlaneseq
    %v495 = vshrl.u32 %v494, 7
    %v496 = vsub.s32 %v493, %v495
    %v497 = vrot.slane %v426, %v496
    %vm498 = vcmask 130112
    %v499 = vsel %vm498, %v497, %v492
    %v500 = vlaneseq
    %v501 = vshrl.u32 %v500, 7
    %v502 = vsub.s32 %v488, %v501
    %v503 = vrot.slane %v429, %v502
    %v504 = vlaneseq
    %v505 = vshrl.u32 %v504, 7
    %v506 = vsub.s32 %v493, %v505
    %v507 = vrot.slane %v432, %v506
    %v508 = vsel %vm498, %v507, %v503
    %v509 = vlaneseq
    %v510 = vshrl.u32 %v509, 7
    %v511 = vsub.s32 %v488, %v510
    %v512 = vrot.slane %v435, %v511
    %v513 = vlaneseq
    %v514 = vshrl.u32 %v513, 7
    %v515 = vsub.s32 %v493, %v514
    %v516 = vrot.slane %v438, %v515
    %v517 = vsel %vm498, %v516, %v512
    %v518 = vlaneseq
    %v519 = vshrl.u32 %v518, 7
    %v520 = vsub.s32 %v488, %v519
    %v521 = vrot.slane %v441, %v520
    %v522 = vlaneseq
    %v523 = vshrl.u32 %v522, 7
    %v524 = vsub.s32 %v493, %v523
    %v525 = vrot.slane %v444, %v524
    %v526 = vsel %vm498, %v525, %v521
    %v527 = vlaneseq
    %v528 = vshrl.u32 %v527, 7
    %v529 = vsub.s32 %v488, %v528
    %v530 = vrot.slane %v447, %v529
    %v531 = vlaneseq
    %v532 = vshrl.u32 %v531, 7
    %v533 = vsub.s32 %v493, %v532
    %v534 = vrot.slane %v450, %v533
    %v535 = vsel %vm498, %v534, %v530
    %v536 = vlaneseq
    %v537 = vshrl.u32 %v536, 7
    %v538 = vsub.s32 %v488, %v537
    %v539 = vrot.slane %v453, %v538
    %v540 = vlaneseq
    %v541 = vshrl.u32 %v540, 7
    %v542 = vsub.s32 %v493, %v541
    %v543 = vrot.slane %v456, %v542
    %v544 = vsel %vm498, %v543, %v539
    %v545 = vlaneseq
    %v546 = vshrl.u32 %v545, 7
    %v547 = vsub.s32 %v488, %v546
    %v548 = vrot.slane %v459, %v547
    %v549 = vlaneseq
    %v550 = vshrl.u32 %v549, 7
    %v551 = vsub.s32 %v493, %v550
    %v552 = vrot.slane %v462, %v551
    %v553 = vsel %vm498, %v552, %v548
    %v554 = vlaneseq
    %v555 = vshrl.u32 %v554, 7
    %v556 = vsub.s32 %v488, %v555
    %v557 = vrot.slane %v465, %v556
    %v558 = vlaneseq
    %v559 = vshrl.u32 %v558, 7
    %v560 = vsub.s32 %v493, %v559
    %v561 = vrot.slane %v468, %v560
    %v562 = vsel %vm498, %v561, %v557
    %vm563 = vcmask 1041409
    %v564 = vsel %vm563, %v508, %v499
    %vm565 = vcmask 1042434
    %v566 = vsel %vm565, %v517, %v564
    %vm567 = vcmask 1043459
    %v568 = vsel %vm567, %v526, %v566
    %vm569 = vcmask 1044484
    %v570 = vsel %vm569, %v535, %v568
    %vm571 = vcmask 1045509
    %v572 = vsel %vm571, %v544, %v570
    %vm573 = vcmask 1046534
    %v574 = vsel %vm573, %v553, %v572
    %vm575 = vcmask 1047559
    %v576 = vsel %vm575, %v562, %v574
    %v578 = vsel %vm470, -inf, %v576
    %v579 = vsel %vm420, %v578, -inf
    %v580 = vrot.slane %v579, 4
    %v581 = vmax.f32 %v579, %v580
    %v582 = vrot.slane %v581, 2
    %v583 = vmax.f32 %v581, %v582
    %v584 = vrot.slane %v583, 1
    %v585 = vmax.f32 %v583, %v584
    %v586 = vsub.f32 %v578, %v585
    %v587 = vmul.f32 %v586, 1.442695
    %v588 = vpow.pop %v587
    %v589 = vsel %vm420, %v588, 0.0
    %v590 = vrot.slane %v589, 4
    %v591 = vadd.f32 %v589, %v590
    %v592 = vrot.slane %v591, 2
    %v593 = vadd.f32 %v591, %v592
    %v594 = vrot.slane %v593, 1
    %v595 = vadd.f32 %v593, %v594
    %v596 = vlog2.pop %v595
    %v597 = vmul.f32 %v596, 0.6931472
    %v598 = vadd.f32 %v597, %v585
    %v599 = vsub.f32 %v578, %v598
    %600 = vst.msk [vmem:[#allocation5] sm:$0xff] %vm420, %v599
    // Predicated region
    $region34: #{tpu_custom_call.1} parent=1 // pred_check
      _
    $region35: #{tpu_custom_call.1} parent=1 // pred_check_branch
      %602 = sbr.rel (0) target = $region37
    $region36: #{tpu_custom_call.1} parent=1 // pred_region
      %s604 = ssub.s32 128, 128
      %605 = vsyncadd [#allocation4], %s604
      %s607 = sshll.u32 [#allocation5], 4
      %s608 = int_to_ptr.vmem [resolvable:$true] %s607
      %610 = dma.vmem_to_hbm [thread:$0]  %s608, 128, %s7, [#allocation4]
    $region37: #{tpu_custom_call.1} parent=1 // pred_fallthru
      _
    // Predicated region
    $region38: #{tpu_custom_call.1} parent=1 // pred_check
      _
    $region39: #{tpu_custom_call.1} parent=1 // pred_check_branch
      %612 = sbr.rel (0) target = $region41
    $region40: #{tpu_custom_call.1} parent=1 // pred_region
      %613 = dma.done [#allocation4], 128
    $region41: #{tpu_custom_call.1} parent=1 // pred_fallthru
      _
    %614 = vsyncpa [#allocation3], 1
    %615 = vsyncpa [#allocation4], 1

</llo_original>
